<compile_context>
chip_gen: v5e
topology: v5e:2x2
jax: 0.10.0
libtpu: 0.0.40
codegen_flags: <defaults>
</compile_context>

<pallas_src>
import functools

import jax
import jax.numpy as jnp
from jax import lax
from jax.experimental import pallas as pl
from jax.experimental.pallas import tpu as pltpu


def _round_up(x, m):
    return (x + m - 1) // m * m


def _spatial_padding_and_tile(hw, batch):
    """Pad H*W to a lane-aligned extent and pick the spatial tile size."""
    hw_p = _round_up(hw, 128)
    tile = max(t for t in (1024, 512, 256, 128) if hw_p % t == 0)
    if tile < 512 and hw_p > 2048:
        # Large but awkwardly factored extent: pad a bit more so we get big
        # tiles (fewer grid steps, better MXU utilisation).
        hw_p = _round_up(hw, 512)
        tile = max(t for t in (1024, 512, 256, 128) if hw_p % t == 0)
    # v7x has 2 TensorCores; keep both busy when batch * num_query_tiles == 1.
    if batch * (hw_p // tile) < 2 and tile > 128:
        tile //= 2
    return hw_p, tile


# ---------------------------------------------------------------------------
# Kernel 1: fused Q/K/V projection (one stacked matmul per spatial tile).
# ---------------------------------------------------------------------------
def _project_kernel(x_ref, w_ref, b_ref, q_ref, k_ref, v_ref,
                    *, c8p, cp, tile, hw, mask_pad):
    # x_ref: (C, T)  w_ref: (CP, C)  b_ref: (CP, 1)
    # q_ref/k_ref: (C8p, T)   v_ref: (Cp, T)
    res = jnp.dot(w_ref[...], x_ref[...],
                  preferred_element_type=jnp.float32) + b_ref[...]      # (CP, T)
    q_ref[...] = res[:c8p]                       # already 0.5-scaled (tanh pre-scale)
    k_ref[...] = res[c8p:2 * c8p]
    v = res[2 * c8p:]                            # already 0.5-scaled (post-affine fold)
    if mask_pad:
        # Zero the spatial-padding columns of V so padded key positions
        # contribute exactly nothing to the attention output.
        col = pl.program_id(1) * tile + lax.broadcasted_iota(jnp.int32, (cp, tile), 1)
        v = jnp.where(col < hw, v, 0.0)
    v_ref[...] = v


def _project(x_flat, w_packed, b_packed, c8p, cp, tile, hw, hw_p):
    B, C, _ = x_flat.shape
    CP = w_packed.shape[0]
    nt = hw_p // tile
    kernel = functools.partial(_project_kernel, c8p=c8p, cp=cp, tile=tile,
                               hw=hw, mask_pad=(hw_p != hw))
    out_shape = (
        jax.ShapeDtypeStruct((B, nt, c8p, tile), jnp.float32),   # Q' = 0.5 * Q
        jax.ShapeDtypeStruct((B, nt, c8p, tile), jnp.float32),   # K
        jax.ShapeDtypeStruct((B, nt, cp, tile), jnp.float32),    # V' = 0.5 * V
    )

    def out_block(rows):
        return pl.BlockSpec((None, None, rows, tile), lambda b, t: (b, t, 0, 0))

    return pl.pallas_call(
        kernel,
        out_shape=out_shape,
        grid_spec=pltpu.PrefetchScalarGridSpec(
            num_scalar_prefetch=0,
            grid=(B, nt),
            in_specs=[
                pl.BlockSpec((None, C, tile), lambda b, t: (b, 0, t)),   # x tile
                pl.BlockSpec((CP, C), lambda b, t: (0, 0)),              # stacked weights
                pl.BlockSpec((CP, 1), lambda b, t: (0, 0)),              # stacked biases
            ],
            out_specs=(out_block(c8p), out_block(c8p), out_block(cp)),
        ),
        compiler_params=pltpu.CompilerParams(
            dimension_semantics=("parallel", "parallel")),
    )(x_flat, w_packed, b_packed)


# ---------------------------------------------------------------------------
# Kernel 2: flash-style sigmoid-gated attention over spatial tiles.
# ---------------------------------------------------------------------------
def _attention_kernel(q_ref, k_ref, v_ref, o_ref, acc_ref,
                      *, kv_resident, use_bf16):
    ki = pl.program_id(2)
    nk = pl.num_programs(2)

    @pl.when(ki == 0)
    def _():
        acc_ref[...] = jnp.zeros_like(acc_ref)

    if kv_resident:
        k = k_ref[ki]                      # (C8p, TK)  whole K/V slab resident in VMEM
        v = v_ref[ki]                      # (Cp,  TK)
    else:
        k = k_ref[...]                     # streamed (C8p, TK) tile
        v = v_ref[...]                     # streamed (Cp,  TK) tile
    q = q_ref[...]                         # (C8p, TQ); already 0.5-scaled

    # Only transpose the tiny key tile so both big matmuls are native A @ B.
    k_t = k.T                              # (TK, C8p)

    if use_bf16:
        q_mm, k_t_mm = q.astype(jnp.bfloat16), k_t.astype(jnp.bfloat16)
    else:
        q_mm, k_t_mm = q, k_t

    # energy_t[j, i] = 0.5 * (Q[:, i] . K[:, j])  -- the 0.5 lives in Wq/bq.
    energy_t = jnp.dot(k_t_mm, q_mm, preferred_element_type=jnp.float32)   # (TK, TQ)

    # sigmoid(z) = 0.5*tanh(0.5*z) + 0.5; both affine factors are folded into
    # the weights (0.5*Wq, 0.5*Wv) and the exact row-sum of V below, so this is
    # a single EUP op per element with no full-size VPU affine passes.
    t = jnp.tanh(energy_t)                                                 # (TK, TQ)

    t_mm = t.astype(jnp.bfloat16) if use_bf16 else t
    v_mm = v.astype(jnp.bfloat16) if use_bf16 else v
    v_sum = jnp.sum(v, axis=1, keepdims=True)                              # (Cp, 1), exact f32

    # out[c, i] += sum_j V'[c, j] * tanh(...)[j, i] + sum_j V'[c, j]
    acc_ref[...] += jnp.dot(v_mm, t_mm,
                            preferred_element_type=jnp.float32) + v_sum    # (Cp, TQ)

    @pl.when(ki == nk - 1)
    def _():
        o_ref[...] = acc_ref[...].astype(o_ref.dtype)


def _attn_vmem_bytes(c8p, cp, t, nt, kv_resident):
    f32 = 4
    io = 2 * (c8p * t + cp * t) * f32                         # q + out (double-buffered)
    kv = 2 * (c8p + cp) * t * (nt if kv_resident else 1) * f32
    acc = cp * t * f32
    temps = (t * 128 + 3 * t * t + (c8p + cp) * t) * f32      # k_t + score temps (+bf16)
    return io + kv + acc + temps


def _attention(q, k, v, c8p, cp, t, hw_p, kv_resident, use_bf16, vmem_limit):
    B = q.shape[0]
    nt = hw_p // t
    kernel = functools.partial(_attention_kernel,
                               kv_resident=kv_resident, use_bf16=use_bf16)

    if kv_resident:
        k_spec = pl.BlockSpec((None, nt, c8p, t), lambda b, qi, ki: (b, 0, 0, 0))
        v_spec = pl.BlockSpec((None, nt, cp, t), lambda b, qi, ki: (b, 0, 0, 0))
    else:
        k_spec = pl.BlockSpec((None, None, c8p, t), lambda b, qi, ki: (b, ki, 0, 0))
        v_spec = pl.BlockSpec((None, None, cp, t), lambda b, qi, ki: (b, ki, 0, 0))

    return pl.pallas_call(
        kernel,
        out_shape=jax.ShapeDtypeStruct((B, cp, hw_p), jnp.float32),
        grid_spec=pltpu.PrefetchScalarGridSpec(
            num_scalar_prefetch=0,
            grid=(B, nt, nt),
            in_specs=[
                pl.BlockSpec((None, None, c8p, t), lambda b, qi, ki: (b, qi, 0, 0)),  # Q
                k_spec,                                                               # K
                v_spec,                                                               # V
            ],
            out_specs=pl.BlockSpec((None, cp, t), lambda b, qi, ki: (b, 0, qi)),
            scratch_shapes=[pltpu.VMEM((cp, t), jnp.float32)],
        ),
        compiler_params=pltpu.CompilerParams(
            dimension_semantics=("parallel", "parallel", "arbitrary"),
            vmem_limit_bytes=vmem_limit),
    )(q, k, v)


# ---------------------------------------------------------------------------
# Public wrapper (matches the PyTorch AttentionSpa1 forward semantics).
# ---------------------------------------------------------------------------
def attention_spa1(x_nchw, wq, bq, wk, bk, wv, bv, *,
                   mxu_bf16=True, kv_resident=None):
    """x_nchw: (B, C, H, W) f32.  Weights: wq/wk (C8, C), wv (C, C), biases (1, dim)."""
    B, C, H, W = x_nchw.shape
    HW = H * W
    C8 = wq.shape[0]
    C8p = _round_up(max(C8, 1), 8)       # sublane-aligned channel padding
    Cp = _round_up(C, 8)

    hw_p, tile = _spatial_padding_and_tile(HW, B)
    nt = hw_p // tile

    # --- pack projection weights; fold the sigmoid's 0.5 pre/post scales -----
    def _pad_rows(w, b, rows):
        pad = rows - w.shape[0]
        return jnp.pad(w, ((0, pad), (0, 0))), jnp.pad(b.reshape(-1), (0, pad))

    wq_p, bq_p = _pad_rows(0.5 * wq, 0.5 * bq, C8p)   # 0.5: tanh pre-scale
    wk_p, bk_p = _pad_rows(wk, bk, C8p)
    wv_p, bv_p = _pad_rows(0.5 * wv, 0.5 * bv, Cp)    # 0.5: sigmoid post-affine fold
    w_packed = jnp.concatenate([wq_p, wk_p, wv_p], axis=0)            # (CP, C)
    b_packed = jnp.concatenate([bq_p, bk_p, bv_p]).reshape(-1, 1)     # (CP, 1)

    # --- channel-major flatten + lane-aligned spatial padding (once) --------
    x_flat = x_nchw.reshape(B, C, HW)
    if hw_p != HW:
        x_flat = jnp.pad(x_flat, ((0, 0), (0, 0), (0, hw_p - HW)))

    # --- kernel 1: project Q/K/V exactly once per batch element -------------
    q, k, v = _project(x_flat, w_packed, b_packed, C8p, Cp, tile, HW, hw_p)

    # --- kernel 2: sigmoid-gated attention -----------------------------------
    resident_bytes = 2 * (C8p + Cp) * hw_p * 4
    if kv_resident is None:
        kv_resident = resident_bytes <= (16 << 20)
    est = _attn_vmem_bytes(C8p, Cp, tile, nt, kv_resident)
    vmem_limit = int(min(max(est * 3 // 2 + (2 << 20), 24 << 20), 52 << 20))

    out = _attention(q, k, v, C8p, Cp, tile, hw_p, kv_resident, mxu_bf16, vmem_limit)

    if Cp != C or hw_p != HW:
        out = out[:, :C, :HW]
    return out.reshape(B, C, H, W)


# ---------------------------------------------------------------------------
# Pure-JAX reference and test harness.
# ---------------------------------------------------------------------------
def _reference(x_nchw, wq, bq, wk, bk, wv, bv):
    B, C, H, W = x_nchw.shape
    HW = H * W
    x = x_nchw.reshape(B, C, HW)                                     # (B, C, HW)
    q = jnp.einsum('dc,bcs->bds', wq, x) + bq.reshape(-1)[None, :, None]
    k = jnp.einsum('dc,bcs->bds', wk, x) + bk.reshape(-1)[None, :, None]
    v = jnp.einsum('dc,bcs->bds', wv, x) + bv.reshape(-1)[None, :, None]
    energy = jnp.einsum('bdi,bdj->bij', q, k)                        # (B, HW, HW)
    attention = jax.nn.sigmoid(energy)                               # module's "softmax"
    out = jnp.einsum('bcj,bij->bci', v, attention)                   # (B, C, HW)
    return out.reshape(B, C, H, W)


def _make_params(key, in_ch, out_ch):
    C8 = out_ch // 8
    kq, kk, kv, kbq, kbk, kbv = jax.random.split(key, 6)
    wq = 0.1 * jax.random.normal(kq, (C8, in_ch), dtype=jnp.float32)
    wk = 0.1 * jax.random.normal(kk, (C8, in_ch), dtype=jnp.float32)
    wv = 0.1 * jax.random.normal(kv, (out_ch, in_ch), dtype=jnp.float32)
    bq = 0.1 * jax.random.normal(kbq, (1, C8), dtype=jnp.float32)
    bk = 0.1 * jax.random.normal(kbk, (1, C8), dtype=jnp.float32)
    bv = 0.1 * jax.random.normal(kbv, (1, out_ch), dtype=jnp.float32)
    return wq, bq, wk, bk, wv, bv


if __name__ == "__main__":
    key = jax.random.PRNGKey(0)
    k1, k2, k3, k4 = jax.random.split(key, 4)

    # Test 1: small shapes.  HW=64 exercises spatial padding (-> 128) with
    # in-kernel masking of padded key columns; C8=2 exercises channel padding.
    B, C, H, W = 2, 16, 8, 8
    x = jax.random.normal(k1, (B, C, H, W), dtype=jnp.float32)
    params = _make_params(k2, C, C)
    ref = _reference(x, *params)
    out = jax.block_until_ready(attention_spa1(x, *params, mxu_bf16=False))
    assert out.shape == (B, C, H, W)
    assert jnp.allclose(out, ref, atol=1e-3, rtol=1e-3), "f32 mismatch (test 1)"

    # Test 2: larger spatial extent -> multi-tile flash loop, VMEM-resident K/V.
    B2, C2, H2, W2 = 1, 32, 32, 32
    x2 = jax.random.normal(k3, (B2, C2, H2, W2), dtype=jnp.float32)
    params2 = _make_params(k4, C2, C2)
    ref2 = _reference(x2, *params2)
    out2 = jax.block_until_ready(attention_spa1(x2, *params2, mxu_bf16=False))
    assert out2.shape == (B2, C2, H2, W2)
    assert jnp.allclose(out2, ref2, atol=1e-3, rtol=1e-3), "f32 mismatch (test 2)"

    # Test 3: bf16 MXU inputs (f32 accumulation) + streamed (non-resident) K/V.
    out3 = jax.block_until_ready(
        attention_spa1(x2, *params2, mxu_bf16=True, kv_resident=False))
    rel_err = jnp.max(jnp.abs(out3 - ref2)) / (jnp.max(jnp.abs(ref2)) + 1e-6)
    assert rel_err < 2e-2, f"bf16 mismatch (test 3): rel err {rel_err}"

    print("KERNEL_OK")
</pallas_src>

<mosaic_0001>
module attributes {stable_mosaic.version = 11 : i64} {
  func.func @_project_kernel(%arg0: i32, %arg1: i32, %arg2: memref<1x16x128xf32, #tpu.memory_space<vmem>>, %arg3: memref<32x16xf32, #tpu.memory_space<vmem>>, %arg4: memref<32x1xf32, #tpu.memory_space<vmem>>, %arg5: memref<1x1x8x128xf32, #tpu.memory_space<vmem>>, %arg6: memref<1x1x8x128xf32, #tpu.memory_space<vmem>>, %arg7: memref<1x1x16x128xf32, #tpu.memory_space<vmem>>) attributes {dimension_semantics = [#tpu.dimension_semantics<parallel>, #tpu.dimension_semantics<parallel>], iteration_bounds = array<i64: 2, 1>, scalar_prefetch = 0 : i64, scratch_operands = 0 : i64, tpu.core_type = #tpu.core_type<tc>, window_params = [{transform_indices = @transform_0, window_bounds = array<i64: 1, 16, 128>}, {pipeline_mode = #tpu.pipeline_mode<synchronous>, transform_indices = @transform_1, window_bounds = array<i64: 32, 16>}, {pipeline_mode = #tpu.pipeline_mode<synchronous>, transform_indices = @transform_2, window_bounds = array<i64: 32, 1>}, {transform_indices = @transform_3, window_bounds = array<i64: 1, 1, 8, 128>}, {transform_indices = @transform_4, window_bounds = array<i64: 1, 1, 8, 128>}, {transform_indices = @transform_5, window_bounds = array<i64: 1, 1, 16, 128>}]} {
    %c0 = arith.constant 0 : index
    %c0_0 = arith.constant 0 : index
    %0 = vector.load %arg3[%c0, %c0_0] : memref<32x16xf32, #tpu.memory_space<vmem>>, vector<32x16xf32>
    %c0_1 = arith.constant 0 : index
    %c0_2 = arith.constant 0 : index
    %c0_3 = arith.constant 0 : index
    %1 = vector.load %arg2[%c0_1, %c0_2, %c0_3] : memref<1x16x128xf32, #tpu.memory_space<vmem>>, vector<1x16x128xf32>
    %2 = vector.shape_cast %1 : vector<1x16x128xf32> to vector<16x128xf32>
    %cst = arith.constant dense<0.000000e+00> : vector<32x128xf32>
    %3 = tpu.matmul %0, %2, %cst {dimension_numbers = #tpu.dot_dimension_numbers<[1], [0], [0], [1], [0, 0, 1, 1], [], []>} : vector<32x16xf32>, vector<16x128xf32>, vector<32x128xf32> -> vector<32x128xf32>
    %c0_4 = arith.constant 0 : index
    %c0_5 = arith.constant 0 : index
    %4 = vector.load %arg4[%c0_4, %c0_5] : memref<32x1xf32, #tpu.memory_space<vmem>>, vector<32x1xf32>
    %5 = vector.broadcast %4 : vector<32x1xf32> to vector<32x128xf32>
    %6 = arith.addf %3, %5 : vector<32x128xf32>
    %7 = vector.extract_strided_slice %6 {offsets = [0, 0], sizes = [8, 128], strides = [1, 1]} : vector<32x128xf32> to vector<8x128xf32>
    %c0_6 = arith.constant 0 : index
    %c0_7 = arith.constant 0 : index
    %c0_8 = arith.constant 0 : index
    %c0_9 = arith.constant 0 : index
    %8 = vector.load %arg5[%c0_6, %c0_7, %c0_8, %c0_9] : memref<1x1x8x128xf32, #tpu.memory_space<vmem>>, vector<1x1x8x128xf32>
    %9 = vector.shape_cast %8 : vector<1x1x8x128xf32> to vector<8x128xf32>
    %10 = vector.shape_cast %7 : vector<8x128xf32> to vector<1x1x8x128xf32>
    tpu.vector_store %arg5[%c0_6, %c0_7, %c0_8, %c0_9], %10 {strides = array<i32>} : memref<1x1x8x128xf32, #tpu.memory_space<vmem>>, vector<1x1x8x128xf32>,
    %11 = vector.extract_strided_slice %6 {offsets = [8, 0], sizes = [8, 128], strides = [1, 1]} : vector<32x128xf32> to vector<8x128xf32>
    %c0_10 = arith.constant 0 : index
    %c0_11 = arith.constant 0 : index
    %c0_12 = arith.constant 0 : index
    %c0_13 = arith.constant 0 : index
    %12 = vector.load %arg6[%c0_10, %c0_11, %c0_12, %c0_13] : memref<1x1x8x128xf32, #tpu.memory_space<vmem>>, vector<1x1x8x128xf32>
    %13 = vector.shape_cast %12 : vector<1x1x8x128xf32> to vector<8x128xf32>
    %14 = vector.shape_cast %11 : vector<8x128xf32> to vector<1x1x8x128xf32>
    tpu.vector_store %arg6[%c0_10, %c0_11, %c0_12, %c0_13], %14 {strides = array<i32>} : memref<1x1x8x128xf32, #tpu.memory_space<vmem>>, vector<1x1x8x128xf32>,
    %15 = vector.extract_strided_slice %6 {offsets = [16, 0], sizes = [16, 128], strides = [1, 1]} : vector<32x128xf32> to vector<16x128xf32>
    %c128_i32 = arith.constant 128 : i32
    %16 = arith.muli %arg1, %c128_i32 : i32
    %17 = tpu.iota {dimensions = array<i32: 1>} : vector<16x128xi32>
    %18 = vector.broadcast %16 : i32 to vector<16x128xi32>
    %19 = arith.addi %18, %17 : vector<16x128xi32>
    %c64_i32 = arith.constant 64 : i32
    %20 = vector.broadcast %c64_i32 : i32 to vector<16x128xi32>
    %21 = arith.cmpi slt, %19, %20 : vector<16x128xi32>
    %cst_14 = arith.constant 0.000000e+00 : f32
    %22 = vector.broadcast %cst_14 : f32 to vector<16x128xf32>
    %23 = arith.select %21, %15, %22 : vector<16x128xi1>, vector<16x128xf32>
    %c0_15 = arith.constant 0 : index
    %c0_16 = arith.constant 0 : index
    %c0_17 = arith.constant 0 : index
    %c0_18 = arith.constant 0 : index
    %24 = vector.load %arg7[%c0_15, %c0_16, %c0_17, %c0_18] : memref<1x1x16x128xf32, #tpu.memory_space<vmem>>, vector<1x1x16x128xf32>
    %25 = vector.shape_cast %24 : vector<1x1x16x128xf32> to vector<16x128xf32>
    %26 = vector.shape_cast %23 : vector<16x128xf32> to vector<1x1x16x128xf32>
    tpu.vector_store %arg7[%c0_15, %c0_16, %c0_17, %c0_18], %26 {strides = array<i32>} : memref<1x1x16x128xf32, #tpu.memory_space<vmem>>, vector<1x1x16x128xf32>,
    return
  }
  func.func @transform_0(%arg0: i32, %arg1: i32) -> (i32, i32, i32) {
    %c0_i32 = arith.constant 0 : i32
    %c0_i32_0 = arith.constant 0 : i32
    return %arg0, %c0_i32, %arg1 : i32, i32, i32
  }
  func.func @transform_1(%arg0: i32, %arg1: i32) -> (i32, i32) {
    %c0_i32 = arith.constant 0 : i32
    %c0_i32_0 = arith.constant 0 : i32
    %c0_i32_1 = arith.constant 0 : i32
    return %c0_i32, %c0_i32_0 : i32, i32
  }
  func.func @transform_2(%arg0: i32, %arg1: i32) -> (i32, i32) {
    %c0_i32 = arith.constant 0 : i32
    %c0_i32_0 = arith.constant 0 : i32
    %c0_i32_1 = arith.constant 0 : i32
    return %c0_i32, %c0_i32_0 : i32, i32
  }
  func.func @transform_3(%arg0: i32, %arg1: i32) -> (i32, i32, i32, i32) {
    %c0_i32 = arith.constant 0 : i32
    %c0_i32_0 = arith.constant 0 : i32
    %c0_i32_1 = arith.constant 0 : i32
    return %arg0, %arg1, %c0_i32, %c0_i32_0 : i32, i32, i32, i32
  }
  func.func @transform_4(%arg0: i32, %arg1: i32) -> (i32, i32, i32, i32) {
    %c0_i32 = arith.constant 0 : i32
    %c0_i32_0 = arith.constant 0 : i32
    %c0_i32_1 = arith.constant 0 : i32
    return %arg0, %arg1, %c0_i32, %c0_i32_0 : i32, i32, i32, i32
  }
  func.func @transform_5(%arg0: i32, %arg1: i32) -> (i32, i32, i32, i32) {
    %c0_i32 = arith.constant 0 : i32
    %c0_i32_0 = arith.constant 0 : i32
    %c0_i32_1 = arith.constant 0 : i32
    return %arg0, %arg1, %c0_i32, %c0_i32_0 : i32, i32, i32, i32
  }
}

</mosaic_0001>

<llo_original>
// kernel: tpu_custom_call.1
$region0: #{tpu_custom_call.1}
  #allocation0 [shape = 'u32[]', space=smem, size = 0x4, offset = 0x4, fixed_abs, tag = 'smem constant byte address 0x4 - core index']
  #allocation1 [shape = 'u32[72,128]{1,0:T(1,128)}', space=vmem, size = 0x9000, scoped, tag = 'internal scratch']
  %s0 = inlined_call_operand.vmem [shape: f32[2,16,128], index: 0, kind: input, shape index: {}]
  %s1 = inlined_call_operand.vmem [shape: f32[32,16], index: 1, kind: input, shape index: {}]
  %s2 = inlined_call_operand.vmem [shape: f32[32,1], index: 2, kind: input, shape index: {}]
  %s3 = inlined_call_operand.hbm [shape: f32[2,1,8,128], index: 3, kind: output, shape index: {0}]
  %s4 = inlined_call_operand.hbm [shape: f32[2,1,8,128], index: 4, kind: output, shape index: {1}]
  %s5 = inlined_call_operand.hbm [shape: f32[2,1,16,128], index: 5, kind: output, shape index: {2}]
  %6 = xla_tuple %s3, %s4, %s5
  %s7 = sld [smem:[#allocation0]]
  $region61: #{tpu_custom_call.1} parent=0
    _
  %s9 = ssub.s32 1, %s7
  %s10 = scalar_select 0, %s9, %s7
  $region1: #{tpu_custom_call.1} parent=0
    #allocation2 [shape = 'u8[8192]{0}', space=vmem, size = 0x2000, scoped, tag = 'output window, operand 0']
    #allocation3 [shape = 's32[2]{0}', space=sflag, size = 0x8, scoped, tag = 'scoped memory for tpu_custom_call.1']
    #allocation4 [shape = 'u8[8192]{0}', space=vmem, size = 0x2000, scoped, tag = 'output window, operand 1']
    #allocation5 [shape = 's32[2]{0}', space=sflag, size = 0x8, scoped, tag = 'scoped memory for tpu_custom_call.1']
    #allocation6 [shape = 'u8[16384]{0}', space=vmem, size = 0x4000, scoped, tag = 'output window, operand 2']
    %11 = vsyncpa [#allocation3], 0
    %s12 = scalar_lea.sflag [#allocation3], 1
    %13 = vsyncpa %s12, 0
    %14 = vsyncpa [#allocation5], 0
    %s15 = scalar_lea.sflag [#allocation5], 1
    %16 = vsyncpa %s15, 0
    loop: start=0, step=1, limit=4
    $region2: #{tpu_custom_call.1} parent=1 // loop_pre_header
      _
    $region3: #{tpu_custom_call.1} parent=1 // loop_header
      %s18 = sphi 0, %s22
      %p19 = scmp.ge.s32.totalorder %s18, 4
      %s25 = sphi 0, %s37
      %s26 = sphi 0, %s33
      %s27 = sphi 0, %s25
      %s28 = sphi 0, %s26
      %s29 = sphi 0, %s27
      %s30 = sphi 0, %s28
      %s42 = sphi 0, %s44
      %s45 = sphi 0, %s42
      %s46 = sphi 0, %s45
      %s62 = sphi 0, %s46
      %s66 = sphi 0, %s66
      %s68 = sphi 0, %s66
      %s69 = sphi 0, %s68
      %s83 = sphi 0, %s69
      %s87 = sphi 0, %s87
      %s89 = sphi 0, %s87
      %s90 = sphi 0, %s89
      %s104 = sphi 0, %s90
      %s112 = sphi 0, %s114
      %s115 = sphi 0, %s112
      %s116 = sphi 0, %s115
      %s132 = sphi 0, %s116
      %s140 = sphi 0, %s142
      %s143 = sphi 0, %s140
      %s144 = sphi 0, %s143
      %s160 = sphi 0, %s144
      %s168 = sphi 0, %s170
      %s171 = sphi 0, %s168
      %s172 = sphi 0, %s171
      %s188 = sphi 0, %s172
    $region4: #{tpu_custom_call.1} parent=1 // loop_header_branch
      %21 = sbr.rel (%p19) target = $region8
    $region5: #{tpu_custom_call.1} parent=1 // loop_body
      %s23 = ssub.s32 %s18, 1
      %s24 = ssub.s32 %s18, 2
      %s31 = sadd.s32 1, %s26
      %p32 = scmp.ge.s32.totalorder %s31, 1
      %s33 = scalar_select %p32, 0, %s31
      %s34 = sadd.s32 1, %s25
      %s35 = scalar_select %p32, %s34, %s25
      %p36 = scmp.ge.s32.totalorder %s35, 2
      %s37 = scalar_select %p36, 0, %s35
      %s38 = ssub.s32 %s25, %s37
      %s39 = ssub.s32 %s26, %s33
      %s40 = sor.u32 %s38, %s39
      %p41 = scmp.eq.s32.totalorder %s40, 0
      %s43 = sadd.s32 %s42, 1
      %s44 = scalar_select %p41, %s42, %s43
      %p47 = pneg %p41
      %p48 = scmp.eq.s32.totalorder %s18, 1
      %p49 = por %p47, %p48
      %p50 = scmp.ne.s32.totalorder %s42, %s45
      %p51 = scmp.eq.s32.totalorder %s18, 0
      %p52 = por %p50, %p51
      %p53 = scmp.ne.s32.totalorder %s42, %s45
      %p54 = scmp.eq.s32.totalorder %s23, 1
      %p55 = por %p53, %p54
      %p56 = scmp.ne.s32.totalorder %s45, %s46
      %p57 = scmp.eq.s32.totalorder %s23, 0
      %p58 = por %p56, %p57
      %p59 = scmp.ne.s32.totalorder %s45, %s46
      %p60 = scmp.eq.s32.totalorder %s24, 1
      %p61 = por %p59, %p60
      %p63 = scmp.ne.s32.totalorder %s46, %s62
      %p64 = scmp.eq.s32.totalorder %s24, 0
      %p65 = por %p63, %p64
      %s67 = sadd.s32 %s66, 1
      %p70 = scmp.eq.s32.totalorder %s18, 1
      %p71 = scmp.ne.s32.totalorder %s66, %s68
      %p72 = scmp.eq.s32.totalorder %s18, 0
      %p73 = por %p71, %p72
      %p74 = scmp.ne.s32.totalorder %s66, %s68
      %p75 = scmp.eq.s32.totalorder %s23, 1
      %p76 = por %p74, %p75
      %p77 = scmp.ne.s32.totalorder %s68, %s69
      %p78 = scmp.eq.s32.totalorder %s23, 0
      %p79 = por %p77, %p78
      %p80 = scmp.ne.s32.totalorder %s68, %s69
      %p81 = scmp.eq.s32.totalorder %s24, 1
      %p82 = por %p80, %p81
      %p84 = scmp.ne.s32.totalorder %s69, %s83
      %p85 = scmp.eq.s32.totalorder %s24, 0
      %p86 = por %p84, %p85
      %s88 = sadd.s32 %s87, 1
      %p91 = scmp.eq.s32.totalorder %s18, 1
      %p92 = scmp.ne.s32.totalorder %s87, %s89
      %p93 = scmp.eq.s32.totalorder %s18, 0
      %p94 = por %p92, %p93
      %p95 = scmp.ne.s32.totalorder %s87, %s89
      %p96 = scmp.eq.s32.totalorder %s23, 1
      %p97 = por %p95, %p96
      %p98 = scmp.ne.s32.totalorder %s89, %s90
      %p99 = scmp.eq.s32.totalorder %s23, 0
      %p100 = por %p98, %p99
      %p101 = scmp.ne.s32.totalorder %s89, %s90
      %p102 = scmp.eq.s32.totalorder %s24, 1
      %p103 = por %p101, %p102
      %p105 = scmp.ne.s32.totalorder %s90, %s104
      %p106 = scmp.eq.s32.totalorder %s24, 0
      %p107 = por %p105, %p106
      %s108 = ssub.s32 %s25, %s37
      %s109 = ssub.s32 %s26, %s33
      %s110 = sor.u32 %s108, %s109
      %p111 = scmp.eq.s32.totalorder %s110, 0
      %s113 = sadd.s32 %s112, 1
      %s114 = scalar_select %p111, %s112, %s113
      %p117 = pneg %p111
      %p118 = scmp.eq.s32.totalorder %s18, 1
      %p119 = por %p117, %p118
      %p120 = scmp.ne.s32.totalorder %s112, %s115
      %p121 = scmp.eq.s32.totalorder %s18, 0
      %p122 = por %p120, %p121
      %p123 = scmp.ne.s32.totalorder %s112, %s115
      %p124 = scmp.eq.s32.totalorder %s23, 1
      %p125 = por %p123, %p124
      %p126 = scmp.ne.s32.totalorder %s115, %s116
      %p127 = scmp.eq.s32.totalorder %s23, 0
      %p128 = por %p126, %p127
      %p129 = scmp.ne.s32.totalorder %s115, %s116
      %p130 = scmp.eq.s32.totalorder %s24, 1
      %p131 = por %p129, %p130
      %p133 = scmp.ne.s32.totalorder %s116, %s132
      %p134 = scmp.eq.s32.totalorder %s24, 0
      %p135 = por %p133, %p134
      %s136 = ssub.s32 %s25, %s37
      %s137 = ssub.s32 %s26, %s33
      %s138 = sor.u32 %s136, %s137
      %p139 = scmp.eq.s32.totalorder %s138, 0
      %s141 = sadd.s32 %s140, 1
      %s142 = scalar_select %p139, %s140, %s141
      %p145 = pneg %p139
      %p146 = scmp.eq.s32.totalorder %s18, 1
      %p147 = por %p145, %p146
      %p148 = scmp.ne.s32.totalorder %s140, %s143
      %p149 = scmp.eq.s32.totalorder %s18, 0
      %p150 = por %p148, %p149
      %p151 = scmp.ne.s32.totalorder %s140, %s143
      %p152 = scmp.eq.s32.totalorder %s23, 1
      %p153 = por %p151, %p152
      %p154 = scmp.ne.s32.totalorder %s143, %s144
      %p155 = scmp.eq.s32.totalorder %s23, 0
      %p156 = por %p154, %p155
      %p157 = scmp.ne.s32.totalorder %s143, %s144
      %p158 = scmp.eq.s32.totalorder %s24, 1
      %p159 = por %p157, %p158
      %p161 = scmp.ne.s32.totalorder %s144, %s160
      %p162 = scmp.eq.s32.totalorder %s24, 0
      %p163 = por %p161, %p162
      %s164 = ssub.s32 %s25, %s37
      %s165 = ssub.s32 %s26, %s33
      %s166 = sor.u32 %s164, %s165
      %p167 = scmp.eq.s32.totalorder %s166, 0
      %s169 = sadd.s32 %s168, 1
      %s170 = scalar_select %p167, %s168, %s169
      %p173 = pneg %p167
      %p174 = scmp.eq.s32.totalorder %s18, 1
      %p175 = por %p173, %p174
      %p176 = scmp.ne.s32.totalorder %s168, %s171
      %p177 = scmp.eq.s32.totalorder %s18, 0
      %p178 = por %p176, %p177
      %p179 = scmp.ne.s32.totalorder %s168, %s171
      %p180 = scmp.eq.s32.totalorder %s23, 1
      %p181 = por %p179, %p180
      %p182 = scmp.ne.s32.totalorder %s171, %s172
      %p183 = scmp.eq.s32.totalorder %s23, 0
      %p184 = por %p182, %p183
      %p185 = scmp.ne.s32.totalorder %s171, %s172
      %p186 = scmp.eq.s32.totalorder %s24, 1
      %p187 = por %p185, %p186
      %p189 = scmp.ne.s32.totalorder %s172, %s188
      %p190 = scmp.eq.s32.totalorder %s24, 0
      %p191 = por %p189, %p190
      %p192 = scmp.le.s32.totalorder 1, %s18
      %p193 = scmp.lt.s32.totalorder %s18, 3
      %p194 = pnand %p192, %p193
      %p195 = pneg %p194
      // Predicated region
      $region9: #{tpu_custom_call.1} parent=5 // pred_check
        _
      $region10: #{tpu_custom_call.1} parent=5 // pred_check_branch
        %197 = sbr.rel (%p194) target = $region12
      $region11: #{tpu_custom_call.1} parent=5 // pred_region
        %s198 = ssub.s32 %s18, 1
        // Predicated region
        $region13: #{tpu_custom_call.1} parent=11 // pred_check
          %p199 = pneg %p79
        $region14: #{tpu_custom_call.1} parent=11 // pred_check_branch
          %201 = sbr.rel (%p199) target = $region16
        $region15: #{tpu_custom_call.1} parent=11 // pred_region
          _
        $region16: #{tpu_custom_call.1} parent=11 // pred_fallthru
          _
        // Predicated region
        $region17: #{tpu_custom_call.1} parent=11 // pred_check
          %p202 = pneg %p100
        $region18: #{tpu_custom_call.1} parent=11 // pred_check_branch
          %204 = sbr.rel (%p202) target = $region20
        $region19: #{tpu_custom_call.1} parent=11 // pred_region
          _
        $region20: #{tpu_custom_call.1} parent=11 // pred_fallthru
          _
      $region12: #{tpu_custom_call.1} parent=5 // pred_fallthru
        _
      %p205 = scmp.lt.s32.totalorder %s18, 2
      // Predicated region
      $region21: #{tpu_custom_call.1} parent=5 // pred_check
        %p206 = pneg %p205
      $region22: #{tpu_custom_call.1} parent=5 // pred_check_branch
        %208 = sbr.rel (%p206) target = $region24
      $region23: #{tpu_custom_call.1} parent=5 // pred_region
        // Predicated region
        $region25: #{tpu_custom_call.1} parent=23 // pred_check
          %p209 = pneg %p52
        $region26: #{tpu_custom_call.1} parent=23 // pred_check_branch
          %211 = sbr.rel (%p209) target = $region28
        $region27: #{tpu_custom_call.1} parent=23 // pred_region
          %p212 = scmp.lt.s32.totalorder %s25, 1
          %s213 = scalar_select %p212, %s25, 1
          %p214 = scmp.lt.s32.totalorder %s26, 0
          %s215 = scalar_select %p214, %s26, 0
          %s216 = smul.addr %s213, 2
          %s217 = sadd.s32 %s215, %s216
          %s218 = smul.addr %s217, 8
          %s219 = scalar_lea.vmem %s0, %s218
        $region28: #{tpu_custom_call.1} parent=23 // pred_fallthru
          _
      $region24: #{tpu_custom_call.1} parent=5 // pred_fallthru
        _
      %p220 = scmp.le.s32.totalorder 1, %s18
      %p221 = scmp.lt.s32.totalorder %s18, 3
      %p222 = pnand %p220, %p221
      %p223 = pneg %p222
      // Predicated region
      $region29: #{tpu_custom_call.1} parent=5 // pred_check
        _
      $region30: #{tpu_custom_call.1} parent=5 // pred_check_branch
        %225 = sbr.rel (%p222) target = $region32
      $region31: #{tpu_custom_call.1} parent=5 // pred_region
        %s226 = ssub.s32 %s18, 1
        %p227 = scmp.lt.s32.totalorder %s27, 1
        %s228 = scalar_select %p227, %s27, 1
        %p229 = scmp.lt.s32.totalorder %s28, 0
        %s230 = scalar_select %p229, %s28, 0
        %s231 = smul.addr %s228, 2
        %s232 = sadd.s32 %s230, %s231
        %s233 = smul.addr %s232, 8
        %s234 = scalar_lea.vmem %s0, %s233
        %p235 = pneg %p58
        %p236 = pneg %p55
        %p237 = pneg %p79
        %p238 = pneg %p76
        %p239 = pneg %p100
        %p240 = pneg %p97
        %p241 = pneg %p128
        %p242 = pneg %p125
        %s243 = sand.u32 %s115, 1
        %s244 = scalar_lea.sflag [#allocation3], %s243
        %s245 = sand.u32 %s115, 1
        %s246 = smul.addr %s245, 8
        %s247 = scalar_lea.vmem [#allocation2], %s246
        %p248 = pneg %p156
        %p249 = pneg %p153
        %s250 = sand.u32 %s23, 1
        %s251 = scalar_lea.sflag [#allocation5], %s250
        %s252 = sand.u32 %s143, 1
        %s253 = smul.addr %s252, 8
        %s254 = scalar_lea.vmem [#allocation4], %s253
        %p255 = pneg %p184
        %p256 = pneg %p181
        %s257 = sand.u32 %s23, 1
        %s258 = scalar_lea.sflag [#allocation5], %s257
        %s259 = sand.u32 %s171, 1
        %s260 = smul.addr %s259, 16
        %s261 = scalar_lea.vmem [#allocation6], %s260
        %p262 = scmp.lt.s32.totalorder %s27, 1
        %s263 = scalar_select %p262, %s27, 1
        %p264 = scmp.lt.s32.totalorder %s28, 0
        %s265 = scalar_select %p264, %s28, 0
        %s266 = smul.addr %s263, 2
        %s267 = sadd.s32 %s265, %s266
        %s268 = smul.addr %s267, 8
        %s269 = scalar_lea.vmem %s0, %s268
        %v270 = vld [vmem:[%s1] sm:$0xff]
        %v271 = vld [vmem:[%s1 + $0x8] sm:$0xff]
        %v272 = vld [vmem:[%s1 + $0x10] sm:$0xff]
        %v273 = vld [vmem:[%s1 + $0x18] sm:$0xff]
        %v274 = vld [vmem:[%s269] sm:$0xff]
        %v275 = vld [vmem:[%s269 + $0x8] sm:$0xff]
        %v276 = vld [vmem:[%s2] sm:$0xff]
        %v277 = vld [vmem:[%s2 + $0x8] sm:$0xff]
        %v278 = vld [vmem:[%s2 + $0x10] sm:$0xff]
        %v279 = vld [vmem:[%s2 + $0x18] sm:$0xff]
        %281 = vset.pattern.permute.xlu0 0
        %282 = vperm.xlu0 %281, %v276
        %v283 = vpop.permute.xlu0 %282
        %286 = vset.pattern.permute.xlu0 0
        %287 = vperm.xlu0 %286, %v277
        %v288 = vpop.permute.xlu0 %287
        %291 = vset.pattern.permute.xlu0 0
        %292 = vperm.xlu0 %291, %v278
        %v293 = vpop.permute.xlu0 %292
        %296 = vset.pattern.permute.xlu0 0
        %297 = vperm.xlu0 %296, %v279
        %v298 = vpop.permute.xlu0 %297
        %vm300 = vcmask 130048
        %v302 = vsel %vm300, %v270, 0
        %v305 = vsel %vm300, %v271, 0
        %v308 = vsel %vm300, %v272, 0
        %v311 = vsel %vm300, %v273, 0
        %313 = vmatpush.msra.mxu0 0.0
        %314 = vmatpush.msra.mxu0 0.0
        %315 = vmatpush.msra.mxu0 0.0
        %316 = vmatpush.msra.mxu0 0.0
        %317 = vmatpush.msra.mxu0 0.0
        %318 = vmatpush.msra.mxu0 0.0
        %319 = vmatpush.msra.mxu0 0.0
        %320 = vmatpush.msra.mxu0 0.0
        %321 = vmatpush.msra.mxu0 0.0
        %322 = vmatpush.msra.mxu0 0.0
        %323 = vmatpush.msra.mxu0 0.0
        %324 = vmatpush.msra.mxu0 0.0
        %325 = vmatpush.msra.mxu0 0.0
        %326 = vmatpush.msra.mxu0 0.0
        %327 = vmatpush.msra.mxu0 %v275
        %328 = vmatpush.msra.mxu0 %v274
        %329 = vmatmul.f32.gmra.mxu0 %v302
        %v330 = vpop.f32.mrf.mxu0
        %v331 = vadd.f32 %v283, %v330
        %332 = vmatmul.f32.gmra.mxu0 %v305
        %v333 = vpop.f32.mrf.mxu0
        %v334 = vadd.f32 %v288, %v333
        %335 = vmatmul.f32.gmra.mxu0 %v308
        %v336 = vpop.f32.mrf.mxu0
        %v337 = vadd.f32 %v293, %v336
        %338 = vmatmul.f32.gmra.mxu0 %v311
        %v339 = vpop.f32.mrf.mxu0
        %v340 = vadd.f32 %v298, %v339
        %341 = vdwg.mxu0
        %342 = vst [vmem:[%s247] sm:$0xff] %v331
        %343 = vst [vmem:[%s254] sm:$0xff] %v334
        %s344 = smul.u32 %s28, 128
        %v345 = vlaneseq
        %v346 = vand.u32 %v345, 127
        %v347 = vstv %s344
        %v348 = vadd.s32 %v347, %v346
        %vm349 = vcmp.lt.s32.totalorder %v348, 64
        %v350 = vsel %vm349, %v337, 0.0
        %v351 = vsel %vm349, %v340, 0.0
        %352 = vst [vmem:[%s261] sm:$0xff] %v350
        %353 = vst [vmem:[%s261 + $0x8] sm:$0xff] %v351
        %s354 = sand.u32 %s115, 1
        %s355 = scalar_lea.sflag [#allocation3], %s354
        %s356 = sand.u32 %s115, 1
        %s357 = smul.addr %s356, 8
        %s358 = scalar_lea.vmem [#allocation2], %s357
        %s359 = sand.u32 %s23, 1
        %s360 = scalar_lea.sflag [#allocation5], %s359
        %s361 = sand.u32 %s143, 1
        %s362 = smul.addr %s361, 8
        %s363 = scalar_lea.vmem [#allocation4], %s362
        %s364 = sand.u32 %s23, 1
        %s365 = scalar_lea.sflag [#allocation5], %s364
        %s366 = sand.u32 %s171, 1
        %s367 = smul.addr %s366, 16
        %s368 = scalar_lea.vmem [#allocation6], %s367
        // Predicated region
        $region33: #{tpu_custom_call.1} parent=31 // pred_check
          %p369 = pneg %p125
        $region34: #{tpu_custom_call.1} parent=31 // pred_check_branch
          %371 = sbr.rel (%p369) target = $region36
        $region35: #{tpu_custom_call.1} parent=31 // pred_region
          %373 = vsyncadd %s355, 0
          %s374 = sadd.s32 %s28, %s27
          %s375 = smul.addr %s374, 8
          %s376 = scalar_lea.hbm %s3, %s375
          %s378 = sshll.u32 %s358, 4
          %s379 = int_to_ptr.vmem [resolvable:$true] %s378
          %s380 = sshll.u32 %s376, 4
          %s381 = int_to_ptr.hbm [resolvable:$true] %s380
          %383 = dma.vmem_to_hbm [thread:$0]  %s379, 128, %s381, %s355
        $region36: #{tpu_custom_call.1} parent=31 // pred_fallthru
          _
        // Predicated region
        $region37: #{tpu_custom_call.1} parent=31 // pred_check
          %p384 = pneg %p153
        $region38: #{tpu_custom_call.1} parent=31 // pred_check_branch
          %386 = sbr.rel (%p384) target = $region40
        $region39: #{tpu_custom_call.1} parent=31 // pred_region
          %388 = vsyncadd %s360, 0
          %s389 = sadd.s32 %s28, %s27
          %s390 = smul.addr %s389, 8
          %s391 = scalar_lea.hbm %s4, %s390
          %s393 = sshll.u32 %s363, 4
          %s394 = int_to_ptr.vmem [resolvable:$true] %s393
          %s395 = sshll.u32 %s391, 4
          %s396 = int_to_ptr.hbm [resolvable:$true] %s395
          %398 = dma.vmem_to_hbm [thread:$0]  %s394, 128, %s396, %s360
        $region40: #{tpu_custom_call.1} parent=31 // pred_fallthru
          _
        // Predicated region
        $region41: #{tpu_custom_call.1} parent=31 // pred_check
          %p399 = pneg %p181
        $region42: #{tpu_custom_call.1} parent=31 // pred_check_branch
          %401 = sbr.rel (%p399) target = $region44
        $region43: #{tpu_custom_call.1} parent=31 // pred_region
          %403 = vsyncadd %s365, 0
          %s404 = smul.addr %s28, 2
          %s405 = smul.addr %s27, 2
          %s406 = sadd.s32 %s404, %s405
          %s407 = smul.addr %s406, 8
          %s408 = scalar_lea.hbm %s5, %s407
          %s409 = sshll.u32 %s368, 4
          %s410 = int_to_ptr.vmem [resolvable:$true] %s409
          %s411 = sshll.u32 %s408, 4
          %s412 = int_to_ptr.hbm [resolvable:$true] %s411
          %417 = dma.vmem_to_hbm [thread:$0]  %s410, 256, %s412, %s365, 128, 128, 8
        $region44: #{tpu_custom_call.1} parent=31 // pred_fallthru
          _
      $region32: #{tpu_custom_call.1} parent=5 // pred_fallthru
        _
      %p418 = scmp.le.s32.totalorder 2, %s18
      // Predicated region
      $region45: #{tpu_custom_call.1} parent=5 // pred_check
        %p419 = pneg %p418
      $region46: #{tpu_custom_call.1} parent=5 // pred_check_branch
        %421 = sbr.rel (%p419) target = $region48
      $region47: #{tpu_custom_call.1} parent=5 // pred_region
        %s422 = ssub.s32 %s18, 2
        // Predicated region
        $region49: #{tpu_custom_call.1} parent=47 // pred_check
          %p423 = pneg %p131
        $region50: #{tpu_custom_call.1} parent=47 // pred_check_branch
          %425 = sbr.rel (%p423) target = $region52
        $region51: #{tpu_custom_call.1} parent=47 // pred_region
          %s426 = sand.u32 %s116, 1
          %s427 = scalar_lea.sflag [#allocation3], %s426
          %s428 = sand.u32 %s116, 1
          %s429 = smul.addr %s428, 8
          %s430 = scalar_lea.vmem [#allocation2], %s429
          %432 = dma.done %s427, 128
        $region52: #{tpu_custom_call.1} parent=47 // pred_fallthru
          _
        // Predicated region
        $region53: #{tpu_custom_call.1} parent=47 // pred_check
          %p433 = pneg %p159
        $region54: #{tpu_custom_call.1} parent=47 // pred_check_branch
          %435 = sbr.rel (%p433) target = $region56
        $region55: #{tpu_custom_call.1} parent=47 // pred_region
          %s436 = sand.u32 %s24, 1
          %s437 = scalar_lea.sflag [#allocation5], %s436
          %s438 = sand.u32 %s144, 1
          %s439 = smul.addr %s438, 8
          %s440 = scalar_lea.vmem [#allocation4], %s439
          %442 = dma.done %s437, 128
        $region56: #{tpu_custom_call.1} parent=47 // pred_fallthru
          _
        // Predicated region
        $region57: #{tpu_custom_call.1} parent=47 // pred_check
          %p443 = pneg %p187
        $region58: #{tpu_custom_call.1} parent=47 // pred_check_branch
          %445 = sbr.rel (%p443) target = $region60
        $region59: #{tpu_custom_call.1} parent=47 // pred_region
          %s446 = sand.u32 %s24, 1
          %s447 = scalar_lea.sflag [#allocation5], %s446
          %s448 = sand.u32 %s172, 1
          %s449 = smul.addr %s448, 16
          %s450 = scalar_lea.vmem [#allocation6], %s449
          %452 = dma.done %s447, 256
        $region60: #{tpu_custom_call.1} parent=47 // pred_fallthru
          _
      $region48: #{tpu_custom_call.1} parent=5 // pred_fallthru
        _
    $region6: #{tpu_custom_call.1} parent=1 // loop_footer
      %s22 = sadd.s32 1, %s18
    $region7: #{tpu_custom_call.1} parent=1 // loop_footer_branch
      %17 = sbr.rel target = $region3
    $region8: #{tpu_custom_call.1} parent=1 // loop_exit
      _
    %453 = vsyncpa [#allocation3], 1
    %s454 = scalar_lea.sflag [#allocation3], 1
    %455 = vsyncpa %s454, 1
    %456 = vsyncpa [#allocation5], 1
    %s457 = scalar_lea.sflag [#allocation5], 1
    %458 = vsyncpa %s457, 1

</llo_original>
